<compile_context>
chip_gen: v7x
topology: tpu7x:2x2x1
jax: 0.10.0
libtpu: 0.0.40
codegen_flags: <defaults>
</compile_context>

<pallas_src>
import functools

import jax
import jax.numpy as jnp
from jax.experimental import pallas as pl
from jax.experimental.pallas import tpu as pltpu

INPUT_SIZE = 300  # hard-coded in the PyTorch module
LANE = 128
SUBLANE = 8


def _round_up(x, m):
    return (x + m - 1) // m * m


# ----------------------------- Pallas kernel --------------------------------
def _fused_heads_kernel(x_ref, w1_ref, b1_ref, w2_ref, b2_ref, w3_ref, b3_ref,
                        o_ref, acc_ref):
    """Both MLP heads in one grid: axis 0 = head (parallel), axis 1 = layer-1 K tile."""
    k = pl.program_id(1)

    @pl.when(k == 0)
    def _():
        acc_ref[...] = jnp.zeros_like(acc_ref)

    # Layer-1 partial product for this K tile (bf16 x bf16 -> f32 accumulate on MXU).
    acc_ref[...] += jnp.dot(x_ref[...], w1_ref[0],
                            preferred_element_type=jnp.float32)

    @pl.when(k == pl.num_programs(1) - 1)
    def _():
        h1 = jnp.maximum(acc_ref[...] + b1_ref[0], 0.0)              # (B_pad, H1)
        h2 = jnp.dot(h1.astype(w2_ref.dtype), w2_ref[0],
                     preferred_element_type=jnp.float32) + b2_ref[0]
        h2 = jnp.maximum(h2, 0.0)                                     # (B_pad, H2)
        h3 = jnp.dot(h2.astype(w3_ref.dtype), w3_ref[0],
                     preferred_element_type=jnp.float32) + b3_ref[0]
        o_ref[0] = jnp.maximum(h3, 0.0).astype(o_ref.dtype)           # (B_pad, 128)


@functools.partial(jax.jit, static_argnames=("tk",))
def fused_heads(x, w1, b1, w2, b2, w3, b3, *, tk):
    """x: (B_pad, S_pad) bf16; w*: (2, in_pad, out_pad) bf16; b*: (2, 1, out_pad) f32."""
    B_pad, S_pad = x.shape
    n_heads = w1.shape[0]
    H1 = w1.shape[2]
    H2 = w2.shape[2]
    C = w3.shape[2]
    grid = (n_heads, S_pad // tk)
    return pl.pallas_call(
        _fused_heads_kernel,
        out_shape=jax.ShapeDtypeStruct((n_heads, B_pad, C), jnp.float32),
        grid_spec=pltpu.PrefetchScalarGridSpec(
            num_scalar_prefetch=0,
            grid=grid,
            in_specs=[
                pl.BlockSpec((B_pad, tk), lambda h, k: (0, k)),      # x K-tile
                pl.BlockSpec((1, tk, H1), lambda h, k: (h, k, 0)),   # W1 K-tile (streamed)
                pl.BlockSpec((1, 1, H1), lambda h, k: (h, 0, 0)),    # b1
                pl.BlockSpec((1, H1, H2), lambda h, k: (h, 0, 0)),   # W2 (per-head resident)
                pl.BlockSpec((1, 1, H2), lambda h, k: (h, 0, 0)),    # b2
                pl.BlockSpec((1, H2, C), lambda h, k: (h, 0, 0)),    # W3
                pl.BlockSpec((1, 1, C), lambda h, k: (h, 0, 0)),     # b3
            ],
            out_specs=pl.BlockSpec((1, B_pad, C), lambda h, k: (h, 0, 0)),
            scratch_shapes=[pltpu.VMEM((B_pad, H1), jnp.float32)],
        ),
        compiler_params=pltpu.CompilerParams(
            dimension_semantics=("parallel", "arbitrary"),
            vmem_limit_bytes=48 * 1024 * 1024,  # headroom below v7x's 64 MiB physical VMEM
        ),
    )(x, w1, b1, w2, b2, w3, b3)


# --------------------------- Parameter container -----------------------------
def _init_linear(key, in_f, out_f):
    """torch.nn.Linear-style init U(-1/sqrt(in), 1/sqrt(in)); returns (in,out) W, (out,) b."""
    kw, kb = jax.random.split(key)
    bound = 1.0 / jnp.sqrt(jnp.float32(in_f))
    w = jax.random.uniform(kw, (in_f, out_f), jnp.float32, -bound, bound)
    b = jax.random.uniform(kb, (out_f,), jnp.float32, -bound, bound)
    return w, b


def _pad2(w, rows, cols):
    return jnp.pad(w, ((0, rows - w.shape[0]), (0, cols - w.shape[1])))


def _pad1(b, n):
    return jnp.pad(b, ((0, n - b.shape[0]),))


class PuncLstmPallas:
    def __init__(self, classes, window_size, key):
        self.sequence_size = INPUT_SIZE * window_size
        S = self.sequence_size
        H1, H2 = S // 2, S // 4
        self.n_punc = len(classes)
        self.n_cap = 2

        # Layer-1 K tile: multiple of 128; larger tile for big windows to cut grid
        # overhead, small tile for small windows to keep zero-padding waste low.
        self.tk = 512 if S >= 2048 else 128
        self.S_pad = _round_up(S, self.tk)
        self.H1_pad = _round_up(H1, LANE)
        self.H2_pad = _round_up(H2, LANE)
        self.C_pad = LANE  # lane-dense output slab; sliced in the wrapper

        keys = jax.random.split(key, 6)
        pw1, pb1 = _init_linear(keys[0], S, H1)
        pw2, pb2 = _init_linear(keys[1], H1, H2)
        pw3, pb3 = _init_linear(keys[2], H2, self.n_punc)
        cw1, cb1 = _init_linear(keys[3], S, H1)
        cw2, cb2 = _init_linear(keys[4], H1, H2)
        cw3, cb3 = _init_linear(keys[5], H2, self.n_cap)

        # Stack both heads on a leading axis; zero-pad to tile-friendly shapes.
        # Weights are stored/streamed in bf16; biases stay f32 (added post-accumulate).
        self.w1 = jnp.stack([_pad2(pw1, self.S_pad, self.H1_pad),
                             _pad2(cw1, self.S_pad, self.H1_pad)]).astype(jnp.bfloat16)
        self.b1 = jnp.stack([_pad1(pb1, self.H1_pad),
                             _pad1(cb1, self.H1_pad)])[:, None, :]
        self.w2 = jnp.stack([_pad2(pw2, self.H1_pad, self.H2_pad),
                             _pad2(cw2, self.H1_pad, self.H2_pad)]).astype(jnp.bfloat16)
        self.b2 = jnp.stack([_pad1(pb2, self.H2_pad),
                             _pad1(cb2, self.H2_pad)])[:, None, :]
        self.w3 = jnp.stack([_pad2(pw3, self.H2_pad, self.C_pad),
                             _pad2(cw3, self.H2_pad, self.C_pad)]).astype(jnp.bfloat16)
        self.b3 = jnp.stack([_pad1(pb3, self.C_pad),
                             _pad1(cb3, self.C_pad)])[:, None, :]

        # TODO(synk): nn.LSTM weights are not instantiated -- the reference forward
        # reshapes `data` (not the LSTM output), so the LSTM has no effect on the
        # returned tensors and is omitted from the kernel.

    def __call__(self, data):
        B = data.shape[0]
        flat = data.reshape(B, self.sequence_size)  # == torch reshape of contiguous (B,T,D)
        B_pad = _round_up(max(B, SUBLANE), SUBLANE)
        x = jnp.zeros((B_pad, self.S_pad), jnp.bfloat16)
        x = x.at[:B, :self.sequence_size].set(flat.astype(jnp.bfloat16))
        out = fused_heads(x, self.w1, self.b1, self.w2, self.b2,
                          self.w3, self.b3, tk=self.tk)
        pred_punc = out[0, :B, :self.n_punc]
        pred_cap = out[1, :B, :self.n_cap]
        return pred_punc, pred_cap


# Pure-JAX reference mirroring the kernel's dtype behaviour (bf16 weights/activations,
# f32 accumulation, f32 bias) for a numerical sanity check.
def _ref_head(x_bf16, w1, b1, w2, b2, w3, b3):
    h = jnp.maximum(jnp.dot(x_bf16, w1, preferred_element_type=jnp.float32) + b1, 0.0)
    h = jnp.maximum(jnp.dot(h.astype(jnp.bfloat16), w2,
                            preferred_element_type=jnp.float32) + b2, 0.0)
    h = jnp.maximum(jnp.dot(h.astype(jnp.bfloat16), w3,
                            preferred_element_type=jnp.float32) + b3, 0.0)
    return h


if __name__ == "__main__":
    classes = ["O", "COMMA", "PERIOD", "QUESTION", "EXCLAM"]  # 5 classes
    window_size = 2                                            # S = 600 (kept small)
    batch = 2

    key = jax.random.PRNGKey(0)
    k_param, k_data = jax.random.split(key)
    model = PuncLstmPallas(classes, window_size, k_param)

    data = jax.random.normal(k_data, (batch, window_size, INPUT_SIZE), jnp.float32)

    pred_punc, pred_cap = model(data)
    jax.block_until_ready((pred_punc, pred_cap))

    # Sanity check against plain-JAX reference using identical padding/dtypes.
    flat = data.reshape(batch, model.sequence_size)
    B_pad = _round_up(max(batch, SUBLANE), SUBLANE)
    x = jnp.zeros((B_pad, model.S_pad), jnp.bfloat16)
    x = x.at[:batch, :model.sequence_size].set(flat.astype(jnp.bfloat16))
    ref = [_ref_head(x, model.w1[h], model.b1[h], model.w2[h], model.b2[h],
                     model.w3[h], model.b3[h]) for h in range(2)]
    ref_punc = ref[0][:batch, :model.n_punc]
    ref_cap = ref[1][:batch, :model.n_cap]

    assert pred_punc.shape == (batch, len(classes))
    assert pred_cap.shape == (batch, 2)
    assert jnp.allclose(pred_punc, ref_punc, rtol=1e-3, atol=1e-3)
    assert jnp.allclose(pred_cap, ref_cap, rtol=1e-3, atol=1e-3)

    print("KERNEL_OK")
</pallas_src>

<mosaic_0001>
module attributes {stable_mosaic.version = 11 : i64} {
  func.func @_fused_heads_kernel(%arg0: i32, %arg1: i32, %arg2: memref<8x128xbf16, #tpu.memory_space<vmem>>, %arg3: memref<1x128x384xbf16, #tpu.memory_space<vmem>>, %arg4: memref<1x1x384xf32, #tpu.memory_space<vmem>>, %arg5: memref<1x384x256xbf16, #tpu.memory_space<vmem>>, %arg6: memref<1x1x256xf32, #tpu.memory_space<vmem>>, %arg7: memref<1x256x128xbf16, #tpu.memory_space<vmem>>, %arg8: memref<1x1x128xf32, #tpu.memory_space<vmem>>, %arg9: memref<1x8x128xf32, #tpu.memory_space<vmem>>, %arg10: memref<8x384xf32, #tpu.memory_space<vmem>>) attributes {dimension_semantics = [#tpu.dimension_semantics<parallel>, #tpu.dimension_semantics<arbitrary>], iteration_bounds = array<i64: 2, 5>, scalar_prefetch = 0 : i64, scratch_operands = 1 : i64, tpu.core_type = #tpu.core_type<tc>, window_params = [{transform_indices = @transform_0, window_bounds = array<i64: 8, 128>}, {transform_indices = @transform_1, window_bounds = array<i64: 1, 128, 384>}, {transform_indices = @transform_2, window_bounds = array<i64: 1, 1, 384>}, {transform_indices = @transform_3, window_bounds = array<i64: 1, 384, 256>}, {transform_indices = @transform_4, window_bounds = array<i64: 1, 1, 256>}, {transform_indices = @transform_5, window_bounds = array<i64: 1, 256, 128>}, {transform_indices = @transform_6, window_bounds = array<i64: 1, 1, 128>}, {transform_indices = @transform_7, window_bounds = array<i64: 1, 8, 128>}]} {
    %c0_i32 = arith.constant 0 : i32
    %0 = arith.cmpi eq, %arg1, %c0_i32 : i32
    %1 = arith.extui %0 : i1 to i32
    %c0_i32_0 = arith.constant 0 : i32
    %2 = arith.cmpi ne, %1, %c0_i32_0 : i32
    scf.if %2 {
      %cst_10 = arith.constant 0.000000e+00 : f32
      %13 = vector.broadcast %cst_10 : f32 to vector<8x384xf32>
      %c0_11 = arith.constant 0 : index
      %c0_12 = arith.constant 0 : index
      %14 = vector.load %arg10[%c0_11, %c0_12] : memref<8x384xf32, #tpu.memory_space<vmem>>, vector<8x384xf32>
      tpu.vector_store %arg10[%c0_11, %c0_12], %13 {strides = array<i32>} : memref<8x384xf32, #tpu.memory_space<vmem>>, vector<8x384xf32>,
    } else {
    }
    %c0 = arith.constant 0 : index
    %c0_1 = arith.constant 0 : index
    %3 = vector.load %arg10[%c0, %c0_1] : memref<8x384xf32, #tpu.memory_space<vmem>>, vector<8x384xf32>
    %c0_2 = arith.constant 0 : index
    %c0_3 = arith.constant 0 : index
    %4 = vector.load %arg2[%c0_2, %c0_3] : memref<8x128xbf16, #tpu.memory_space<vmem>>, vector<8x128xbf16>
    %c0_4 = arith.constant 0 : index
    %c0_5 = arith.constant 0 : index
    %c0_6 = arith.constant 0 : index
    %5 = vector.load %arg3[%c0_4, %c0_5, %c0_6] : memref<1x128x384xbf16, #tpu.memory_space<vmem>>, vector<1x128x384xbf16>
    %6 = vector.shape_cast %5 : vector<1x128x384xbf16> to vector<128x384xbf16>
    %cst = arith.constant dense<0.000000e+00> : vector<8x384xf32>
    %7 = tpu.matmul %4, %6, %cst {dimension_numbers = #tpu.dot_dimension_numbers<[1], [0], [0], [1], [0, 0, 1, 1], [], []>} : vector<8x128xbf16>, vector<128x384xbf16>, vector<8x384xf32> -> vector<8x384xf32>
    %8 = arith.addf %3, %7 : vector<8x384xf32>
    %c0_7 = arith.constant 0 : index
    %c0_8 = arith.constant 0 : index
    %9 = vector.load %arg10[%c0_7, %c0_8] : memref<8x384xf32, #tpu.memory_space<vmem>>, vector<8x384xf32>
    tpu.vector_store %arg10[%c0_7, %c0_8], %8 {strides = array<i32>} : memref<8x384xf32, #tpu.memory_space<vmem>>, vector<8x384xf32>,
    %c4_i32 = arith.constant 4 : i32
    %10 = arith.cmpi eq, %arg1, %c4_i32 : i32
    %11 = arith.extui %10 : i1 to i32
    %c0_i32_9 = arith.constant 0 : i32
    %12 = arith.cmpi ne, %11, %c0_i32_9 : i32
    scf.if %12 {
      %c0_10 = arith.constant 0 : index
      %c0_11 = arith.constant 0 : index
      %13 = vector.load %arg10[%c0_10, %c0_11] : memref<8x384xf32, #tpu.memory_space<vmem>>, vector<8x384xf32>
      %c0_12 = arith.constant 0 : index
      %c0_13 = arith.constant 0 : index
      %c0_14 = arith.constant 0 : index
      %14 = vector.load %arg4[%c0_12, %c0_13, %c0_14] : memref<1x1x384xf32, #tpu.memory_space<vmem>>, vector<1x1x384xf32>
      %15 = vector.shape_cast %14 : vector<1x1x384xf32> to vector<1x384xf32>
      %16 = vector.broadcast %15 : vector<1x384xf32> to vector<8x384xf32>
      %17 = arith.addf %13, %16 : vector<8x384xf32>
      %cst_15 = arith.constant 0.000000e+00 : f32
      %18 = vector.broadcast %cst_15 : f32 to vector<8x384xf32>
      %19 = arith.maximumf %17, %18 : vector<8x384xf32>
      %20 = arith.truncf %19 : vector<8x384xf32> to vector<8x384xbf16>
      %c0_16 = arith.constant 0 : index
      %c0_17 = arith.constant 0 : index
      %c0_18 = arith.constant 0 : index
      %21 = vector.load %arg5[%c0_16, %c0_17, %c0_18] : memref<1x384x256xbf16, #tpu.memory_space<vmem>>, vector<1x384x256xbf16>
      %22 = vector.shape_cast %21 : vector<1x384x256xbf16> to vector<384x256xbf16>
      %cst_19 = arith.constant dense<0.000000e+00> : vector<8x256xf32>
      %23 = tpu.matmul %20, %22, %cst_19 {dimension_numbers = #tpu.dot_dimension_numbers<[1], [0], [0], [1], [0, 0, 1, 1], [], []>} : vector<8x384xbf16>, vector<384x256xbf16>, vector<8x256xf32> -> vector<8x256xf32>
      %c0_20 = arith.constant 0 : index
      %c0_21 = arith.constant 0 : index
      %c0_22 = arith.constant 0 : index
      %24 = vector.load %arg6[%c0_20, %c0_21, %c0_22] : memref<1x1x256xf32, #tpu.memory_space<vmem>>, vector<1x1x256xf32>
      %25 = vector.shape_cast %24 : vector<1x1x256xf32> to vector<1x256xf32>
      %26 = vector.broadcast %25 : vector<1x256xf32> to vector<8x256xf32>
      %27 = arith.addf %23, %26 : vector<8x256xf32>
      %cst_23 = arith.constant 0.000000e+00 : f32
      %28 = vector.broadcast %cst_23 : f32 to vector<8x256xf32>
      %29 = arith.maximumf %27, %28 : vector<8x256xf32>
      %30 = arith.truncf %29 : vector<8x256xf32> to vector<8x256xbf16>
      %c0_24 = arith.constant 0 : index
      %c0_25 = arith.constant 0 : index
      %c0_26 = arith.constant 0 : index
      %31 = vector.load %arg7[%c0_24, %c0_25, %c0_26] : memref<1x256x128xbf16, #tpu.memory_space<vmem>>, vector<1x256x128xbf16>
      %32 = vector.shape_cast %31 : vector<1x256x128xbf16> to vector<256x128xbf16>
      %cst_27 = arith.constant dense<0.000000e+00> : vector<8x128xf32>
      %33 = tpu.matmul %30, %32, %cst_27 {dimension_numbers = #tpu.dot_dimension_numbers<[1], [0], [0], [1], [0, 0, 1, 1], [], []>} : vector<8x256xbf16>, vector<256x128xbf16>, vector<8x128xf32> -> vector<8x128xf32>
      %c0_28 = arith.constant 0 : index
      %c0_29 = arith.constant 0 : index
      %c0_30 = arith.constant 0 : index
      %34 = vector.load %arg8[%c0_28, %c0_29, %c0_30] : memref<1x1x128xf32, #tpu.memory_space<vmem>>, vector<1x1x128xf32>
      %35 = vector.shape_cast %34 : vector<1x1x128xf32> to vector<1x128xf32>
      %36 = vector.broadcast %35 : vector<1x128xf32> to vector<8x128xf32>
      %37 = arith.addf %33, %36 : vector<8x128xf32>
      %cst_31 = arith.constant 0.000000e+00 : f32
      %38 = vector.broadcast %cst_31 : f32 to vector<8x128xf32>
      %39 = arith.maximumf %37, %38 : vector<8x128xf32>
      %c0_32 = arith.constant 0 : index
      %c0_33 = arith.constant 0 : index
      %c0_34 = arith.constant 0 : index
      %40 = vector.load %arg9[%c0_32, %c0_33, %c0_34] : memref<1x8x128xf32, #tpu.memory_space<vmem>>, vector<1x8x128xf32>
      %41 = vector.shape_cast %40 : vector<1x8x128xf32> to vector<8x128xf32>
      %42 = vector.shape_cast %39 : vector<8x128xf32> to vector<1x8x128xf32>
      tpu.vector_store %arg9[%c0_32, %c0_33, %c0_34], %42 {strides = array<i32>} : memref<1x8x128xf32, #tpu.memory_space<vmem>>, vector<1x8x128xf32>,
    } else {
    }
    return
  }
  func.func @transform_0(%arg0: i32, %arg1: i32) -> (i32, i32) {
    %c0_i32 = arith.constant 0 : i32
    %c0_i32_0 = arith.constant 0 : i32
    return %c0_i32, %arg1 : i32, i32
  }
  func.func @transform_1(%arg0: i32, %arg1: i32) -> (i32, i32, i32) {
    %c0_i32 = arith.constant 0 : i32
    %c0_i32_0 = arith.constant 0 : i32
    return %arg0, %arg1, %c0_i32 : i32, i32, i32
  }
  func.func @transform_2(%arg0: i32, %arg1: i32) -> (i32, i32, i32) {
    %c0_i32 = arith.constant 0 : i32
    %c0_i32_0 = arith.constant 0 : i32
    %c0_i32_1 = arith.constant 0 : i32
    return %arg0, %c0_i32, %c0_i32_0 : i32, i32, i32
  }
  func.func @transform_3(%arg0: i32, %arg1: i32) -> (i32, i32, i32) {
    %c0_i32 = arith.constant 0 : i32
    %c0_i32_0 = arith.constant 0 : i32
    %c0_i32_1 = arith.constant 0 : i32
    return %arg0, %c0_i32, %c0_i32_0 : i32, i32, i32
  }
  func.func @transform_4(%arg0: i32, %arg1: i32) -> (i32, i32, i32) {
    %c0_i32 = arith.constant 0 : i32
    %c0_i32_0 = arith.constant 0 : i32
    %c0_i32_1 = arith.constant 0 : i32
    return %arg0, %c0_i32, %c0_i32_0 : i32, i32, i32
  }
  func.func @transform_5(%arg0: i32, %arg1: i32) -> (i32, i32, i32) {
    %c0_i32 = arith.constant 0 : i32
    %c0_i32_0 = arith.constant 0 : i32
    %c0_i32_1 = arith.constant 0 : i32
    return %arg0, %c0_i32, %c0_i32_0 : i32, i32, i32
  }
  func.func @transform_6(%arg0: i32, %arg1: i32) -> (i32, i32, i32) {
    %c0_i32 = arith.constant 0 : i32
    %c0_i32_0 = arith.constant 0 : i32
    %c0_i32_1 = arith.constant 0 : i32
    return %arg0, %c0_i32, %c0_i32_0 : i32, i32, i32
  }
  func.func @transform_7(%arg0: i32, %arg1: i32) -> (i32, i32, i32) {
    %c0_i32 = arith.constant 0 : i32
    %c0_i32_0 = arith.constant 0 : i32
    %c0_i32_1 = arith.constant 0 : i32
    return %arg0, %c0_i32, %c0_i32_0 : i32, i32, i32
  }
}

</mosaic_0001>

<llo_original>
// kernel: fused_heads.1
$region0: #{fused_heads.1}
  #allocation0 [shape = 'u32[]', space=smem, size = 0x4, offset = 0x4, fixed_abs, tag = 'smem constant byte address 0x4 - core index']
  #allocation1 [shape = 'u32[144,128]{1,0:T(1,128)}', space=vmem, size = 0x12000, scoped, tag = 'internal scratch']
  #allocation2 [shape = 'f32[8,384]{1,0:T(8,128)}', space=vmem, size = 0x3000, scoped, tag = 'scratch operand']
  %s0 = inlined_call_operand.hbm [shape: bf16[8,640], index: 0, kind: input, shape index: {}]
  %s1 = inlined_call_operand.hbm [shape: bf16[2,640,384], index: 1, kind: input, shape index: {}]
  %s2 = inlined_call_operand.vmem [shape: f32[2,1,384], index: 2, kind: input, shape index: {}]
  %s3 = inlined_call_operand.hbm [shape: bf16[2,384,256], index: 3, kind: input, shape index: {}]
  %s4 = inlined_call_operand.vmem [shape: f32[2,1,256], index: 4, kind: input, shape index: {}]
  %s5 = inlined_call_operand.hbm [shape: bf16[2,256,128], index: 5, kind: input, shape index: {}]
  %s6 = inlined_call_operand.vmem [shape: f32[2,1,128], index: 6, kind: input, shape index: {}]
  %s7 = inlined_call_operand.hbm [shape: f32[2,8,128], index: 7, kind: output, shape index: {}]
  %s8 = sld [smem:[#allocation0]]
  $region85: #{fused_heads.1} parent=0
    _
  %s10 = ssub.s32 1, %s8
  %s11 = scalar_select 0, %s10, %s8
  $region1: #{fused_heads.1} parent=0
    #allocation3 [shape = 'u8[4096]{0}', space=vmem, size = 0x1000, scoped, tag = 'input window, operand 0']
    #allocation4 [shape = 's32[2]{0}', space=sflag, size = 0x8, scoped, tag = 'scoped memory for fused_heads.1']
    #allocation5 [shape = 's32[2]{0}', space=sflag, size = 0x8, scoped, tag = 'scoped memory for fused_heads.1']
    #allocation6 [shape = 'u8[196608]{0}', space=vmem, size = 0x30000, scoped, tag = 'input window, operand 1']
    #allocation7 [shape = 's32[2]{0}', space=sflag, size = 0x8, scoped, tag = 'scoped memory for fused_heads.1']
    #allocation8 [shape = 'u8[393216]{0}', space=vmem, size = 0x60000, scoped, tag = 'input window, operand 3']
    #allocation9 [shape = 'u8[131072]{0}', space=vmem, size = 0x20000, scoped, tag = 'input window, operand 5']
    #allocation10 [shape = 's32[2]{0}', space=sflag, size = 0x8, scoped, tag = 'scoped memory for fused_heads.1']
    #allocation11 [shape = 'u8[8192]{0}', space=vmem, size = 0x2000, scoped, tag = 'output window, operand 0']
    %12 = vsyncpa [#allocation4], 0
    %s13 = scalar_lea.sflag [#allocation4], 1
    %14 = vsyncpa %s13, 0
    %15 = vsyncpa [#allocation7], 0
    %s16 = scalar_lea.sflag [#allocation7], 1
    %17 = vsyncpa %s16, 0
    %18 = vsyncpa [#allocation10], 0
    %s19 = scalar_lea.sflag [#allocation10], 1
    %20 = vsyncpa %s19, 0
    %21 = vsyncpa [#allocation5], 0
    %s22 = scalar_lea.sflag [#allocation5], 1
    %23 = vsyncpa %s22, 0
    loop: start=0, step=1, limit=12
    $region2: #{fused_heads.1} parent=1 // loop_pre_header
      _
    $region3: #{fused_heads.1} parent=1 // loop_header
      %s25 = sphi 0, %s29
      %p26 = scmp.ge.s32.totalorder %s25, 12
      %s32 = sphi 0, %s44
      %s33 = sphi 0, %s40
      %s34 = sphi 0, %s32
      %s35 = sphi 0, %s33
      %s36 = sphi 0, %s34
      %s37 = sphi 0, %s35
      %s47 = sphi 0, %s49
      %s50 = sphi 0, %s47
      %s51 = sphi 0, %s50
      %s67 = sphi 0, %s51
      %s75 = sphi 0, %s77
      %s78 = sphi 0, %s75
      %s79 = sphi 0, %s78
      %s95 = sphi 0, %s79
      %s101 = sphi 0, %s103
      %s104 = sphi 0, %s101
      %s105 = sphi 0, %s104
      %s121 = sphi 0, %s105
      %s127 = sphi 0, %s129
      %s130 = sphi 0, %s127
      %s131 = sphi 0, %s130
      %s147 = sphi 0, %s131
      %s153 = sphi 0, %s155
      %s156 = sphi 0, %s153
      %s157 = sphi 0, %s156
      %s173 = sphi 0, %s157
      %s179 = sphi 0, %s181
      %s182 = sphi 0, %s179
      %s183 = sphi 0, %s182
      %s199 = sphi 0, %s183
      %s205 = sphi 0, %s207
      %s208 = sphi 0, %s205
      %s209 = sphi 0, %s208
      %s225 = sphi 0, %s209
      %s231 = sphi 0, %s233
      %s234 = sphi 0, %s231
      %s235 = sphi 0, %s234
      %s251 = sphi 0, %s235
    $region4: #{fused_heads.1} parent=1 // loop_header_branch
      %28 = sbr.rel (%p26) target = $region8
    $region5: #{fused_heads.1} parent=1 // loop_body
      %s30 = ssub.s32 %s25, 1
      %s31 = ssub.s32 %s25, 2
      %s38 = sadd.s32 1, %s33
      %p39 = scmp.ge.s32.totalorder %s38, 5
      %s40 = scalar_select %p39, 0, %s38
      %s41 = sadd.s32 1, %s32
      %s42 = scalar_select %p39, %s41, %s32
      %p43 = scmp.ge.s32.totalorder %s42, 2
      %s44 = scalar_select %p43, 0, %s42
      %s45 = ssub.s32 %s33, %s40
      %p46 = scmp.eq.s32.totalorder %s45, 0
      %s48 = sadd.s32 %s47, 1
      %s49 = scalar_select %p46, %s47, %s48
      %p52 = pneg %p46
      %p53 = scmp.eq.s32.totalorder %s25, 9
      %p54 = por %p52, %p53
      %p55 = scmp.ne.s32.totalorder %s47, %s50
      %p56 = scmp.eq.s32.totalorder %s25, 0
      %p57 = por %p55, %p56
      %p58 = scmp.ne.s32.totalorder %s47, %s50
      %p59 = scmp.eq.s32.totalorder %s30, 9
      %p60 = por %p58, %p59
      %p61 = scmp.ne.s32.totalorder %s50, %s51
      %p62 = scmp.eq.s32.totalorder %s30, 0
      %p63 = por %p61, %p62
      %p64 = scmp.ne.s32.totalorder %s50, %s51
      %p65 = scmp.eq.s32.totalorder %s31, 9
      %p66 = por %p64, %p65
      %p68 = scmp.ne.s32.totalorder %s51, %s67
      %p69 = scmp.eq.s32.totalorder %s31, 0
      %p70 = por %p68, %p69
      %s71 = ssub.s32 %s32, %s44
      %s72 = ssub.s32 %s33, %s40
      %s73 = sor.u32 %s71, %s72
      %p74 = scmp.eq.s32.totalorder %s73, 0
      %s76 = sadd.s32 %s75, 1
      %s77 = scalar_select %p74, %s75, %s76
      %p80 = pneg %p74
      %p81 = scmp.eq.s32.totalorder %s25, 9
      %p82 = por %p80, %p81
      %p83 = scmp.ne.s32.totalorder %s75, %s78
      %p84 = scmp.eq.s32.totalorder %s25, 0
      %p85 = por %p83, %p84
      %p86 = scmp.ne.s32.totalorder %s75, %s78
      %p87 = scmp.eq.s32.totalorder %s30, 9
      %p88 = por %p86, %p87
      %p89 = scmp.ne.s32.totalorder %s78, %s79
      %p90 = scmp.eq.s32.totalorder %s30, 0
      %p91 = por %p89, %p90
      %p92 = scmp.ne.s32.totalorder %s78, %s79
      %p93 = scmp.eq.s32.totalorder %s31, 9
      %p94 = por %p92, %p93
      %p96 = scmp.ne.s32.totalorder %s79, %s95
      %p97 = scmp.eq.s32.totalorder %s31, 0
      %p98 = por %p96, %p97
      %s99 = ssub.s32 %s32, %s44
      %p100 = scmp.eq.s32.totalorder %s99, 0
      %s102 = sadd.s32 %s101, 1
      %s103 = scalar_select %p100, %s101, %s102
      %p106 = pneg %p100
      %p107 = scmp.eq.s32.totalorder %s25, 9
      %p108 = por %p106, %p107
      %p109 = scmp.ne.s32.totalorder %s101, %s104
      %p110 = scmp.eq.s32.totalorder %s25, 0
      %p111 = por %p109, %p110
      %p112 = scmp.ne.s32.totalorder %s101, %s104
      %p113 = scmp.eq.s32.totalorder %s30, 9
      %p114 = por %p112, %p113
      %p115 = scmp.ne.s32.totalorder %s104, %s105
      %p116 = scmp.eq.s32.totalorder %s30, 0
      %p117 = por %p115, %p116
      %p118 = scmp.ne.s32.totalorder %s104, %s105
      %p119 = scmp.eq.s32.totalorder %s31, 9
      %p120 = por %p118, %p119
      %p122 = scmp.ne.s32.totalorder %s105, %s121
      %p123 = scmp.eq.s32.totalorder %s31, 0
      %p124 = por %p122, %p123
      %s125 = ssub.s32 %s32, %s44
      %p126 = scmp.eq.s32.totalorder %s125, 0
      %s128 = sadd.s32 %s127, 1
      %s129 = scalar_select %p126, %s127, %s128
      %p132 = pneg %p126
      %p133 = scmp.eq.s32.totalorder %s25, 9
      %p134 = por %p132, %p133
      %p135 = scmp.ne.s32.totalorder %s127, %s130
      %p136 = scmp.eq.s32.totalorder %s25, 0
      %p137 = por %p135, %p136
      %p138 = scmp.ne.s32.totalorder %s127, %s130
      %p139 = scmp.eq.s32.totalorder %s30, 9
      %p140 = por %p138, %p139
      %p141 = scmp.ne.s32.totalorder %s130, %s131
      %p142 = scmp.eq.s32.totalorder %s30, 0
      %p143 = por %p141, %p142
      %p144 = scmp.ne.s32.totalorder %s130, %s131
      %p145 = scmp.eq.s32.totalorder %s31, 9
      %p146 = por %p144, %p145
      %p148 = scmp.ne.s32.totalorder %s131, %s147
      %p149 = scmp.eq.s32.totalorder %s31, 0
      %p150 = por %p148, %p149
      %s151 = ssub.s32 %s32, %s44
      %p152 = scmp.eq.s32.totalorder %s151, 0
      %s154 = sadd.s32 %s153, 1
      %s155 = scalar_select %p152, %s153, %s154
      %p158 = pneg %p152
      %p159 = scmp.eq.s32.totalorder %s25, 9
      %p160 = por %p158, %p159
      %p161 = scmp.ne.s32.totalorder %s153, %s156
      %p162 = scmp.eq.s32.totalorder %s25, 0
      %p163 = por %p161, %p162
      %p164 = scmp.ne.s32.totalorder %s153, %s156
      %p165 = scmp.eq.s32.totalorder %s30, 9
      %p166 = por %p164, %p165
      %p167 = scmp.ne.s32.totalorder %s156, %s157
      %p168 = scmp.eq.s32.totalorder %s30, 0
      %p169 = por %p167, %p168
      %p170 = scmp.ne.s32.totalorder %s156, %s157
      %p171 = scmp.eq.s32.totalorder %s31, 9
      %p172 = por %p170, %p171
      %p174 = scmp.ne.s32.totalorder %s157, %s173
      %p175 = scmp.eq.s32.totalorder %s31, 0
      %p176 = por %p174, %p175
      %s177 = ssub.s32 %s32, %s44
      %p178 = scmp.eq.s32.totalorder %s177, 0
      %s180 = sadd.s32 %s179, 1
      %s181 = scalar_select %p178, %s179, %s180
      %p184 = pneg %p178
      %p185 = scmp.eq.s32.totalorder %s25, 9
      %p186 = por %p184, %p185
      %p187 = scmp.ne.s32.totalorder %s179, %s182
      %p188 = scmp.eq.s32.totalorder %s25, 0
      %p189 = por %p187, %p188
      %p190 = scmp.ne.s32.totalorder %s179, %s182
      %p191 = scmp.eq.s32.totalorder %s30, 9
      %p192 = por %p190, %p191
      %p193 = scmp.ne.s32.totalorder %s182, %s183
      %p194 = scmp.eq.s32.totalorder %s30, 0
      %p195 = por %p193, %p194
      %p196 = scmp.ne.s32.totalorder %s182, %s183
      %p197 = scmp.eq.s32.totalorder %s31, 9
      %p198 = por %p196, %p197
      %p200 = scmp.ne.s32.totalorder %s183, %s199
      %p201 = scmp.eq.s32.totalorder %s31, 0
      %p202 = por %p200, %p201
      %s203 = ssub.s32 %s32, %s44
      %p204 = scmp.eq.s32.totalorder %s203, 0
      %s206 = sadd.s32 %s205, 1
      %s207 = scalar_select %p204, %s205, %s206
      %p210 = pneg %p204
      %p211 = scmp.eq.s32.totalorder %s25, 9
      %p212 = por %p210, %p211
      %p213 = scmp.ne.s32.totalorder %s205, %s208
      %p214 = scmp.eq.s32.totalorder %s25, 0
      %p215 = por %p213, %p214
      %p216 = scmp.ne.s32.totalorder %s205, %s208
      %p217 = scmp.eq.s32.totalorder %s30, 9
      %p218 = por %p216, %p217
      %p219 = scmp.ne.s32.totalorder %s208, %s209
      %p220 = scmp.eq.s32.totalorder %s30, 0
      %p221 = por %p219, %p220
      %p222 = scmp.ne.s32.totalorder %s208, %s209
      %p223 = scmp.eq.s32.totalorder %s31, 9
      %p224 = por %p222, %p223
      %p226 = scmp.ne.s32.totalorder %s209, %s225
      %p227 = scmp.eq.s32.totalorder %s31, 0
      %p228 = por %p226, %p227
      %s229 = ssub.s32 %s32, %s44
      %p230 = scmp.eq.s32.totalorder %s229, 0
      %s232 = sadd.s32 %s231, 1
      %s233 = scalar_select %p230, %s231, %s232
      %p236 = pneg %p230
      %p237 = scmp.eq.s32.totalorder %s25, 9
      %p238 = por %p236, %p237
      %p239 = scmp.ne.s32.totalorder %s231, %s234
      %p240 = scmp.eq.s32.totalorder %s25, 0
      %p241 = por %p239, %p240
      %p242 = scmp.ne.s32.totalorder %s231, %s234
      %p243 = scmp.eq.s32.totalorder %s30, 9
      %p244 = por %p242, %p243
      %p245 = scmp.ne.s32.totalorder %s234, %s235
      %p246 = scmp.eq.s32.totalorder %s30, 0
      %p247 = por %p245, %p246
      %p248 = scmp.ne.s32.totalorder %s234, %s235
      %p249 = scmp.eq.s32.totalorder %s31, 9
      %p250 = por %p248, %p249
      %p252 = scmp.ne.s32.totalorder %s235, %s251
      %p253 = scmp.eq.s32.totalorder %s31, 0
      %p254 = por %p252, %p253
      %p255 = scmp.le.s32.totalorder 1, %s25
      %p256 = scmp.lt.s32.totalorder %s25, 11
      %p257 = pnand %p255, %p256
      %p258 = pneg %p257
      // Predicated region
      $region9: #{fused_heads.1} parent=5 // pred_check
        _
      $region10: #{fused_heads.1} parent=5 // pred_check_branch
        %260 = sbr.rel (%p257) target = $region12
      $region11: #{fused_heads.1} parent=5 // pred_region
        %s261 = ssub.s32 %s25, 1
      $region12: #{fused_heads.1} parent=5 // pred_fallthru
        _
      %p262 = scmp.lt.s32.totalorder %s25, 10
      // Predicated region
      $region13: #{fused_heads.1} parent=5 // pred_check
        %p263 = pneg %p262
      $region14: #{fused_heads.1} parent=5 // pred_check_branch
        %265 = sbr.rel (%p263) target = $region16
      $region15: #{fused_heads.1} parent=5 // pred_region
        // Predicated region
        $region17: #{fused_heads.1} parent=15 // pred_check
          %p266 = pneg %p57
        $region18: #{fused_heads.1} parent=15 // pred_check_branch
          %268 = sbr.rel (%p266) target = $region20
        $region19: #{fused_heads.1} parent=15 // pred_region
          %s269 = sand.u32 %s47, 1
          %s270 = scalar_lea.sflag [#allocation4], %s269
          %s271 = sand.u32 %s47, 1
          %s272 = smul.addr %s271, 4
          %s273 = scalar_lea.vmem [#allocation3], %s272
          %s275 = ssub.s32 64, 64
          %276 = vsyncadd %s270, %s275
          %s277 = smul.addr %s33, 64
          %s278 = scalar_lea.hbm %s0, %s277
          %s280 = sshll.u32 %s273, 4
          %s281 = int_to_ptr.vmem [resolvable:$true] %s280
          %283 = dma.hbm_to_vmem [thread:$0]  %s278, 64, %s281, %s270
        $region20: #{fused_heads.1} parent=15 // pred_fallthru
          _
        // Predicated region
        $region21: #{fused_heads.1} parent=15 // pred_check
          %p284 = pneg %p85
        $region22: #{fused_heads.1} parent=15 // pred_check_branch
          %286 = sbr.rel (%p284) target = $region24
        $region23: #{fused_heads.1} parent=15 // pred_region
          %s287 = sand.u32 %s25, 1
          %s288 = scalar_lea.sflag [#allocation7], %s287
          %s289 = sand.u32 %s75, 1
          %s290 = smul.addr %s289, 192
          %s291 = scalar_lea.vmem [#allocation6], %s290
          %s292 = smul.u32 16, %s33
          %s294 = ssub.s32 3072, 3072
          %295 = vsyncadd %s288, %s294
          %s296 = smul.addr %s292, 3
          %s297 = smul.addr %s32, 240
          %s298 = sadd.s32 %s296, %s297
          %s299 = smul.addr %s298, 64
          %s300 = scalar_lea.hbm %s1, %s299
          %s301 = sshll.u32 %s291, 4
          %s302 = int_to_ptr.vmem [resolvable:$true] %s301
          %307 = dma.hbm_to_vmem [thread:$0]  %s300, 3072, %s302, %s288, 192, 192, 12
        $region24: #{fused_heads.1} parent=15 // pred_fallthru
          _
        // Predicated region
        $region25: #{fused_heads.1} parent=15 // pred_check
          %p308 = pneg %p111
        $region26: #{fused_heads.1} parent=15 // pred_check_branch
          %310 = sbr.rel (%p308) target = $region28
        $region27: #{fused_heads.1} parent=15 // pred_region
          %p311 = scmp.lt.s32.totalorder %s32, 1
          %s312 = scalar_select %p311, %s32, 1
          %s313 = smul.addr %s312, 3
          %s314 = scalar_lea.vmem %s2, %s313
        $region28: #{fused_heads.1} parent=15 // pred_fallthru
          _
        // Predicated region
        $region29: #{fused_heads.1} parent=15 // pred_check
          %p315 = pneg %p137
        $region30: #{fused_heads.1} parent=15 // pred_check_branch
          %317 = sbr.rel (%p315) target = $region32
        $region31: #{fused_heads.1} parent=15 // pred_region
          %s318 = sand.u32 %s25, 1
          %s319 = scalar_lea.sflag [#allocation7], %s318
          %s320 = sand.u32 %s127, 1
          %s321 = smul.addr %s320, 384
          %s322 = scalar_lea.vmem [#allocation8], %s321
          %s324 = ssub.s32 6144, 6144
          %325 = vsyncadd %s319, %s324
          %s326 = smul.addr %s32, 96
          %s327 = smul.addr %s326, 64
          %s328 = scalar_lea.hbm %s3, %s327
          %s329 = sshll.u32 %s322, 4
          %s330 = int_to_ptr.vmem [resolvable:$true] %s329
          %335 = dma.hbm_to_vmem [thread:$0]  %s328, 6144, %s330, %s319, 128, 128, 8
        $region32: #{fused_heads.1} parent=15 // pred_fallthru
          _
        // Predicated region
        $region33: #{fused_heads.1} parent=15 // pred_check
          %p336 = pneg %p163
        $region34: #{fused_heads.1} parent=15 // pred_check_branch
          %338 = sbr.rel (%p336) target = $region36
        $region35: #{fused_heads.1} parent=15 // pred_region
          %p339 = scmp.lt.s32.totalorder %s32, 1
          %s340 = scalar_select %p339, %s32, 1
          %s341 = smul.addr %s340, 2
          %s342 = scalar_lea.vmem %s4, %s341
        $region36: #{fused_heads.1} parent=15 // pred_fallthru
          _
        // Predicated region
        $region37: #{fused_heads.1} parent=15 // pred_check
          %p343 = pneg %p189
        $region38: #{fused_heads.1} parent=15 // pred_check_branch
          %345 = sbr.rel (%p343) target = $region40
        $region39: #{fused_heads.1} parent=15 // pred_region
          %s346 = sand.u32 %s179, 1
          %s347 = scalar_lea.sflag [#allocation10], %s346
          %s348 = sand.u32 %s179, 1
          %s349 = smul.addr %s348, 128
          %s350 = scalar_lea.vmem [#allocation9], %s349
          %s352 = ssub.s32 2048, 2048
          %353 = vsyncadd %s347, %s352
          %s354 = smul.addr %s32, 32
          %s355 = smul.addr %s354, 64
          %s356 = scalar_lea.hbm %s5, %s355
          %s357 = sshll.u32 %s350, 4
          %s358 = int_to_ptr.vmem [resolvable:$true] %s357
          %363 = dma.hbm_to_vmem [thread:$0]  %s356, 2048, %s358, %s347, 64, 64, 4
        $region40: #{fused_heads.1} parent=15 // pred_fallthru
          _
        // Predicated region
        $region41: #{fused_heads.1} parent=15 // pred_check
          %p364 = pneg %p215
        $region42: #{fused_heads.1} parent=15 // pred_check_branch
          %366 = sbr.rel (%p364) target = $region44
        $region43: #{fused_heads.1} parent=15 // pred_region
          %p367 = scmp.lt.s32.totalorder %s32, 1
          %s368 = scalar_select %p367, %s32, 1
          %s369 = scalar_lea.vmem %s6, %s368
        $region44: #{fused_heads.1} parent=15 // pred_fallthru
          _
      $region16: #{fused_heads.1} parent=5 // pred_fallthru
        _
      %p370 = scmp.le.s32.totalorder 1, %s25
      %p371 = scmp.lt.s32.totalorder %s25, 11
      %p372 = pnand %p370, %p371
      %p373 = pneg %p372
      // Predicated region
      $region45: #{fused_heads.1} parent=5 // pred_check
        _
      $region46: #{fused_heads.1} parent=5 // pred_check_branch
        %375 = sbr.rel (%p372) target = $region48
      $region47: #{fused_heads.1} parent=5 // pred_region
        %s376 = ssub.s32 %s25, 1
        %s377 = sand.u32 %s50, 1
        %s378 = scalar_lea.sflag [#allocation4], %s377
        %s379 = sand.u32 %s50, 1
        %s380 = smul.addr %s379, 4
        %s381 = scalar_lea.vmem [#allocation3], %s380
        // Predicated region
        $region49: #{fused_heads.1} parent=47 // pred_check
          %p382 = pneg %p63
        $region50: #{fused_heads.1} parent=47 // pred_check_branch
          %384 = sbr.rel (%p382) target = $region52
        $region51: #{fused_heads.1} parent=47 // pred_region
          %385 = dma.done %s378, 64
        $region52: #{fused_heads.1} parent=47 // pred_fallthru
          _
        %s386 = sand.u32 %s30, 1
        %s387 = scalar_lea.sflag [#allocation7], %s386
        %s388 = sand.u32 %s78, 1
        %s389 = smul.addr %s388, 192
        %s390 = scalar_lea.vmem [#allocation6], %s389
        // Predicated region
        $region53: #{fused_heads.1} parent=47 // pred_check
          %p391 = pneg %p91
        $region54: #{fused_heads.1} parent=47 // pred_check_branch
          %393 = sbr.rel (%p391) target = $region56
        $region55: #{fused_heads.1} parent=47 // pred_region
          %394 = dma.done %s387, 3072
        $region56: #{fused_heads.1} parent=47 // pred_fallthru
          _
        %s395 = sand.u32 %s30, 1
        %s396 = scalar_lea.sflag [#allocation7], %s395
        %s397 = sand.u32 %s130, 1
        %s398 = smul.addr %s397, 384
        %s399 = scalar_lea.vmem [#allocation8], %s398
        // Predicated region
        $region57: #{fused_heads.1} parent=47 // pred_check
          %p400 = pneg %p143
        $region58: #{fused_heads.1} parent=47 // pred_check_branch
          %402 = sbr.rel (%p400) target = $region60
        $region59: #{fused_heads.1} parent=47 // pred_region
          %403 = dma.done %s396, 6144
        $region60: #{fused_heads.1} parent=47 // pred_fallthru
          _
        %s404 = sand.u32 %s182, 1
        %s405 = scalar_lea.sflag [#allocation10], %s404
        %s406 = sand.u32 %s182, 1
        %s407 = smul.addr %s406, 128
        %s408 = scalar_lea.vmem [#allocation9], %s407
        // Predicated region
        $region61: #{fused_heads.1} parent=47 // pred_check
          %p409 = pneg %p195
        $region62: #{fused_heads.1} parent=47 // pred_check_branch
          %411 = sbr.rel (%p409) target = $region64
        $region63: #{fused_heads.1} parent=47 // pred_region
          %412 = dma.done %s405, 2048
        $region64: #{fused_heads.1} parent=47 // pred_fallthru
          _
        %s413 = sand.u32 %s50, 1
        %s414 = scalar_lea.sflag [#allocation4], %s413
        %s415 = sand.u32 %s50, 1
        %s416 = smul.addr %s415, 4
        %s417 = scalar_lea.vmem [#allocation3], %s416
        %p418 = pneg %p63
        %p419 = pneg %p60
        %s420 = sand.u32 %s30, 1
        %s421 = scalar_lea.sflag [#allocation7], %s420
        %s422 = sand.u32 %s78, 1
        %s423 = smul.addr %s422, 192
        %s424 = scalar_lea.vmem [#allocation6], %s423
        %p425 = pneg %p91
        %p426 = pneg %p88
        %p427 = scmp.lt.s32.totalorder %s34, 1
        %s428 = scalar_select %p427, %s34, 1
        %s429 = smul.addr %s428, 3
        %s430 = scalar_lea.vmem %s2, %s429
        %p431 = pneg %p117
        %p432 = pneg %p114
        %s433 = sand.u32 %s30, 1
        %s434 = scalar_lea.sflag [#allocation7], %s433
        %s435 = sand.u32 %s130, 1
        %s436 = smul.addr %s435, 384
        %s437 = scalar_lea.vmem [#allocation8], %s436
        %p438 = pneg %p143
        %p439 = pneg %p140
        %p440 = scmp.lt.s32.totalorder %s34, 1
        %s441 = scalar_select %p440, %s34, 1
        %s442 = smul.addr %s441, 2
        %s443 = scalar_lea.vmem %s4, %s442
        %p444 = pneg %p169
        %p445 = pneg %p166
        %s446 = sand.u32 %s182, 1
        %s447 = scalar_lea.sflag [#allocation10], %s446
        %s448 = sand.u32 %s182, 1
        %s449 = smul.addr %s448, 128
        %s450 = scalar_lea.vmem [#allocation9], %s449
        %p451 = pneg %p195
        %p452 = pneg %p192
        %p453 = scmp.lt.s32.totalorder %s34, 1
        %s454 = scalar_select %p453, %s34, 1
        %s455 = scalar_lea.vmem %s6, %s454
        %p456 = pneg %p221
        %p457 = pneg %p218
        %p458 = pneg %p247
        %p459 = pneg %p244
        %s460 = sand.u32 %s234, 1
        %s461 = scalar_lea.sflag [#allocation5], %s460
        %s462 = sand.u32 %s234, 1
        %s463 = smul.addr %s462, 8
        %s464 = scalar_lea.vmem [#allocation11], %s463
        %s465 = smul.u32 16, %s35
        %p466 = scmp.lt.s32.totalorder %s34, 1
        %s467 = scalar_select %p466, %s34, 1
        %s468 = smul.addr %s467, 3
        %s469 = scalar_lea.vmem %s2, %s468
        %p470 = scmp.lt.s32.totalorder %s34, 1
        %s471 = scalar_select %p470, %s34, 1
        %s472 = smul.addr %s471, 2
        %s473 = scalar_lea.vmem %s4, %s472
        %p474 = scmp.lt.s32.totalorder %s34, 1
        %s475 = scalar_select %p474, %s34, 1
        %s476 = scalar_lea.vmem %s6, %s475
        %p478 = scmp.eq.s32.totalorder %s35, 0
        // Predicated region
        $region65: #{fused_heads.1} parent=47 // pred_check
          %p479 = pneg %p478
        $region66: #{fused_heads.1} parent=47 // pred_check_branch
          %481 = sbr.rel (%p479) target = $region68
        $region67: #{fused_heads.1} parent=47 // pred_region
          %482 = vst [vmem:[#allocation2] sm:$0xff] 0.0
          %483 = vst [vmem:[#allocation2 + $0x8] sm:$0xff] 0.0
          %484 = vst [vmem:[#allocation2 + $0x10] sm:$0xff] 0.0
        $region68: #{fused_heads.1} parent=47 // pred_fallthru
          _
        %v485 = vld [vmem:[#allocation2] sm:$0xff]
        %v486 = vld [vmem:[#allocation2 + $0x8] sm:$0xff]
        %v487 = vld [vmem:[#allocation2 + $0x10] sm:$0xff]
        %v488 = vld [vmem:[%s381] sm:$0xf]
        %v489 = vld [vmem:[%s390] sm:$0xff]
        %v490 = vld [vmem:[%s390 + $0x8] sm:$0xf]
        %v491 = vld [vmem:[%s390 + $0xc] sm:$0xff]
        %v492 = vld [vmem:[%s390 + $0x14] sm:$0xf]
        %v493 = vld [vmem:[%s390 + $0x18] sm:$0xff]
        %v494 = vld [vmem:[%s390 + $0x20] sm:$0xf]
        %v495 = vld [vmem:[%s390 + $0x24] sm:$0xff]
        %v496 = vld [vmem:[%s390 + $0x2c] sm:$0xf]
        %v497 = vld [vmem:[%s390 + $0x30] sm:$0xff]
        %v498 = vld [vmem:[%s390 + $0x38] sm:$0xf]
        %v499 = vld [vmem:[%s390 + $0x3c] sm:$0xff]
        %v500 = vld [vmem:[%s390 + $0x44] sm:$0xf]
        %v501 = vld [vmem:[%s390 + $0x48] sm:$0xff]
        %v502 = vld [vmem:[%s390 + $0x50] sm:$0xf]
        %v503 = vld [vmem:[%s390 + $0x54] sm:$0xff]
        %v504 = vld [vmem:[%s390 + $0x5c] sm:$0xf]
        %v505 = vld [vmem:[%s390 + $0x60] sm:$0xff]
        %v506 = vld [vmem:[%s390 + $0x68] sm:$0xf]
        %v507 = vld [vmem:[%s390 + $0x6c] sm:$0xff]
        %v508 = vld [vmem:[%s390 + $0x74] sm:$0xf]
        %v509 = vld [vmem:[%s390 + $0x78] sm:$0xff]
        %v510 = vld [vmem:[%s390 + $0x80] sm:$0xf]
        %v511 = vld [vmem:[%s390 + $0x84] sm:$0xff]
        %v512 = vld [vmem:[%s390 + $0x8c] sm:$0xf]
        %v513 = vld [vmem:[%s390 + $0x90] sm:$0xff]
        %v514 = vld [vmem:[%s390 + $0x98] sm:$0xf]
        %v515 = vld [vmem:[%s390 + $0x9c] sm:$0xff]
        %v516 = vld [vmem:[%s390 + $0xa4] sm:$0xf]
        %v517 = vld [vmem:[%s390 + $0xa8] sm:$0xff]
        %v518 = vld [vmem:[%s390 + $0xb0] sm:$0xf]
        %v519 = vld [vmem:[%s390 + $0xb4] sm:$0xff]
        %v520 = vld [vmem:[%s390 + $0xbc] sm:$0xf]
        %v553 = vunpack.c.l.b16 %v489
        %v554 = vunpack.c.h.b16 %v489
        %v555 = vunpack.c.l.b16 %v490
        %v556 = vunpack.c.l.b16 %v491
        %v557 = vunpack.c.h.b16 %v491
        %v558 = vunpack.c.l.b16 %v492
        %v559 = vunpack.c.l.b16 %v493
        %v560 = vunpack.c.h.b16 %v493
        %v561 = vunpack.c.l.b16 %v494
        %v562 = vunpack.c.l.b16 %v495
        %v563 = vunpack.c.h.b16 %v495
        %v564 = vunpack.c.l.b16 %v496
        %v565 = vunpack.c.l.b16 %v497
        %v566 = vunpack.c.h.b16 %v497
        %v567 = vunpack.c.l.b16 %v498
        %v568 = vunpack.c.l.b16 %v499
        %v569 = vunpack.c.h.b16 %v499
        %v570 = vunpack.c.l.b16 %v500
        %v571 = vunpack.c.l.b16 %v501
        %v572 = vunpack.c.h.b16 %v501
        %v573 = vunpack.c.l.b16 %v502
        %v574 = vunpack.c.l.b16 %v503
        %v575 = vunpack.c.h.b16 %v503
        %v576 = vunpack.c.l.b16 %v504
        %v577 = vunpack.c.l.b16 %v505
        %v578 = vunpack.c.h.b16 %v505
        %v579 = vunpack.c.l.b16 %v506
        %v580 = vunpack.c.l.b16 %v507
        %v581 = vunpack.c.h.b16 %v507
        %v582 = vunpack.c.l.b16 %v508
        %v583 = vunpack.c.l.b16 %v509
        %v584 = vunpack.c.h.b16 %v509
        %v585 = vunpack.c.l.b16 %v510
        %v586 = vunpack.c.l.b16 %v511
        %v587 = vunpack.c.h.b16 %v511
        %v588 = vunpack.c.l.b16 %v512
        %v589 = vunpack.c.l.b16 %v513
        %v590 = vunpack.c.h.b16 %v513
        %v591 = vunpack.c.l.b16 %v514
        %v592 = vunpack.c.l.b16 %v515
        %v593 = vunpack.c.h.b16 %v515
        %v594 = vunpack.c.l.b16 %v516
        %v595 = vunpack.c.l.b16 %v517
        %v596 = vunpack.c.h.b16 %v517
        %v597 = vunpack.c.l.b16 %v518
        %v598 = vunpack.c.l.b16 %v519
        %v599 = vunpack.c.h.b16 %v519
        %v600 = vunpack.c.l.b16 %v520
        %v601 = vpack.c.b16 %v556, %v553
        %v602 = vpack.c.b16 %v557, %v554
        %v603 = vpack.c.b16 %v558, %v555
        %v604 = vpack.c.b16 %v562, %v559
        %v605 = vpack.c.b16 %v563, %v560
        %v606 = vpack.c.b16 %v564, %v561
        %v607 = vpack.c.b16 %v568, %v565
        %v608 = vpack.c.b16 %v569, %v566
        %v609 = vpack.c.b16 %v570, %v567
        %v610 = vpack.c.b16 %v574, %v571
        %v611 = vpack.c.b16 %v575, %v572
        %v612 = vpack.c.b16 %v576, %v573
        %v613 = vpack.c.b16 %v580, %v577
        %v614 = vpack.c.b16 %v581, %v578
        %v615 = vpack.c.b16 %v582, %v579
        %v616 = vpack.c.b16 %v586, %v583
        %v617 = vpack.c.b16 %v587, %v584
        %v618 = vpack.c.b16 %v588, %v585
        %v619 = vpack.c.b16 %v592, %v589
        %v620 = vpack.c.b16 %v593, %v590
        %v621 = vpack.c.b16 %v594, %v591
        %v622 = vpack.c.b16 %v598, %v595
        %v623 = vpack.c.b16 %v599, %v596
        %v624 = vpack.c.b16 %v600, %v597
        %649 = vmatprep.subr.bf16.mxu0 %v602
        %650 = vmatpush1.bf16.msra.mxu0 %v601
        %651 = vmatprep.subr.bf16.mxu0 %v605
        %652 = vmatpush1.bf16.msra.mxu0 %v604
        %653 = vmatprep.subr.bf16.mxu0 %v608
        %654 = vmatpush1.bf16.msra.mxu0 %v607
        %655 = vmatprep.subr.bf16.mxu0 %v611
        %656 = vmatpush1.bf16.msra.mxu0 %v610
        %657 = vmatprep.subr.bf16.mxu0 %v614
        %658 = vmatpush1.bf16.msra.mxu0 %v613
        %659 = vmatprep.subr.bf16.mxu0 %v617
        %660 = vmatpush1.bf16.msra.mxu0 %v616
        %661 = vmatprep.subr.bf16.mxu0 %v620
        %662 = vmatpush1.bf16.msra.mxu0 %v619
        %663 = vmatprep.subr.bf16.mxu0 %v623
        %664 = vmatpush1.bf16.msra.mxu0 %v622
        %665 = vmatprep.subr.bf16.mxu0 0
        %666 = vmatpush1.bf16.msra.mxu0 0
        %667 = vmatprep.subr.bf16.mxu0 0
        %668 = vmatpush1.bf16.msra.mxu0 0
        %669 = vmatprep.subr.bf16.mxu0 0
        %670 = vmatpush1.bf16.msra.mxu0 0
        %671 = vmatprep.subr.bf16.mxu0 0
        %672 = vmatpush1.bf16.msra.mxu0 0
        %673 = vmatprep.subr.bf16.mxu0 0
        %674 = vmatpush1.bf16.msra.mxu0 0
        %675 = vmatprep.subr.bf16.mxu0 0
        %676 = vmatpush1.bf16.msra.mxu0 0
        %677 = vmatprep.subr.bf16.mxu0 0
        %678 = vmatpush1.bf16.msra.mxu0 0
        %679 = vmatprep.subr.bf16.mxu0 0
        %680 = vmatpush1.bf16.msra.mxu0 0
        %681 = vmatprep.mubr.bf16.mxu0 0
        %682 = vmatmul.mubr.bf16.gmra.mrb[0].mxu0 %v488
        %v683 = vpop.f32.mrb[0].mxu0
        %v684 = vadd.f32 0.0, %v683
        %v685 = vpop.f32.mrb[0].mxu0
        %v686 = vadd.f32 0.0, %v685
        %v687 = vpop.f32.mrb[0].mxu0
        %v688 = vpop.f32.mrb[0].mxu0
        %689 = vdwg.mxu0
        %690 = vmatprep.subr.bf16.mxu0 0
        %691 = vmatpush1.bf16.msra.mxu0 %v603
        %692 = vmatprep.subr.bf16.mxu0 0
        %693 = vmatpush1.bf16.msra.mxu0 %v606
        %694 = vmatprep.subr.bf16.mxu0 0
        %695 = vmatpush1.bf16.msra.mxu0 %v609
        %696 = vmatprep.subr.bf16.mxu0 0
        %697 = vmatpush1.bf16.msra.mxu0 %v612
        %698 = vmatprep.subr.bf16.mxu0 0
        %699 = vmatpush1.bf16.msra.mxu0 %v615
        %700 = vmatprep.subr.bf16.mxu0 0
        %701 = vmatpush1.bf16.msra.mxu0 %v618
        %702 = vmatprep.subr.bf16.mxu0 0
        %703 = vmatpush1.bf16.msra.mxu0 %v621
        %704 = vmatprep.subr.bf16.mxu0 0
        %705 = vmatpush1.bf16.msra.mxu0 %v624
        %706 = vmatprep.subr.bf16.mxu0 0
        %707 = vmatpush1.bf16.msra.mxu0 0
        %708 = vmatprep.subr.bf16.mxu0 0
        %709 = vmatpush1.bf16.msra.mxu0 0
        %710 = vmatprep.subr.bf16.mxu0 0
        %711 = vmatpush1.bf16.msra.mxu0 0
        %712 = vmatprep.subr.bf16.mxu0 0
        %713 = vmatpush1.bf16.msra.mxu0 0
        %714 = vmatprep.subr.bf16.mxu0 0
        %715 = vmatpush1.bf16.msra.mxu0 0
        %716 = vmatprep.subr.bf16.mxu0 0
        %717 = vmatpush1.bf16.msra.mxu0 0
        %718 = vmatprep.subr.bf16.mxu0 0
        %719 = vmatpush1.bf16.msra.mxu0 0
        %720 = vmatprep.subr.bf16.mxu0 0
        %721 = vmatpush1.bf16.msra.mxu0 0
        %722 = vmatprep.mubr.bf16.mxu0 0
        %723 = vmatmul.mubr.bf16.gmra.mrb[0].mxu0 %v488
        %v724 = vpop.f32.mrb[0].mxu0
        %v725 = vadd.f32 0.0, %v724
        %v726 = vpop.f32.mrb[0].mxu0
        %v727 = vpop.f32.mrb[0].mxu0
        %v728 = vpop.f32.mrb[0].mxu0
        %729 = vdwg.mxu0
        %v730 = vadd.f32 %v485, %v684
        %v731 = vadd.f32 %v486, %v686
        %v732 = vadd.f32 %v487, %v725
        %733 = vst [vmem:[#allocation2] sm:$0xff] %v730
        %734 = vst [vmem:[#allocation2 + $0x8] sm:$0xff] %v731
        %735 = vst [vmem:[#allocation2 + $0x10] sm:$0xff] %v732
        %p736 = scmp.eq.s32.totalorder %s35, 4
        // Predicated region
        $region69: #{fused_heads.1} parent=47 // pred_check
          %p737 = pneg %p736
        $region70: #{fused_heads.1} parent=47 // pred_check_branch
          %739 = sbr.rel (%p737) target = $region72
        $region71: #{fused_heads.1} parent=47 // pred_region
          %v740 = vld [vmem:[#allocation2] sm:$0xff]
          %v741 = vld [vmem:[#allocation2 + $0x8] sm:$0xff]
          %v742 = vld [vmem:[#allocation2 + $0x10] sm:$0xff]
          %v743 = vld [vmem:[%s469] sm:$0x7]
          %v745 = vlaneseq
          %v746 = vshrl.u32 %v745, 7
          %v747 = vsub.s32 0, %v746
          %v748 = vrot.slane %v743, %v747
          %v749 = vlaneseq
          %v750 = vshrl.u32 %v749, 7
          %v751 = vsub.s32 1, %v750
          %v752 = vrot.slane %v743, %v751
          %v753 = vlaneseq
          %v754 = vshrl.u32 %v753, 7
          %v755 = vsub.s32 2, %v754
          %v756 = vrot.slane %v743, %v755
          %v760 = vadd.f32 %v740, %v748
          %v761 = vadd.f32 %v741, %v752
          %v762 = vadd.f32 %v742, %v756
          %v763 = vmax.f32 %v760, 0.0
          %v764 = vmax.f32 %v761, 0.0
          %v765 = vmax.f32 %v762, 0.0
          %v766 = vpack.c.bf16 %v763, %v763
          %v767 = vpack.c.bf16 %v764, %v764
          %v768 = vpack.c.bf16 %v765, %v765
          %v769 = vld [vmem:[%s399] sm:$0xff]
          %v770 = vld [vmem:[%s399 + $0x8] sm:$0xff]
          %v771 = vld [vmem:[%s399 + $0x10] sm:$0xff]
          %v772 = vld [vmem:[%s399 + $0x18] sm:$0xff]
          %v773 = vld [vmem:[%s399 + $0x20] sm:$0xff]
          %v774 = vld [vmem:[%s399 + $0x28] sm:$0xff]
          %v775 = vld [vmem:[%s399 + $0x30] sm:$0xff]
          %v776 = vld [vmem:[%s399 + $0x38] sm:$0xff]
          %v777 = vld [vmem:[%s399 + $0x40] sm:$0xff]
          %v778 = vld [vmem:[%s399 + $0x48] sm:$0xff]
          %v779 = vld [vmem:[%s399 + $0x50] sm:$0xff]
          %v780 = vld [vmem:[%s399 + $0x58] sm:$0xff]
          %v781 = vld [vmem:[%s399 + $0x60] sm:$0xff]
          %v782 = vld [vmem:[%s399 + $0x68] sm:$0xff]
          %v783 = vld [vmem:[%s399 + $0x70] sm:$0xff]
          %v784 = vld [vmem:[%s399 + $0x78] sm:$0xff]
          %v785 = vld [vmem:[%s399 + $0x80] sm:$0xff]
          %v786 = vld [vmem:[%s399 + $0x88] sm:$0xff]
          %v787 = vld [vmem:[%s399 + $0x90] sm:$0xff]
          %v788 = vld [vmem:[%s399 + $0x98] sm:$0xff]
          %v789 = vld [vmem:[%s399 + $0xa0] sm:$0xff]
          %v790 = vld [vmem:[%s399 + $0xa8] sm:$0xff]
          %v791 = vld [vmem:[%s399 + $0xb0] sm:$0xff]
          %v792 = vld [vmem:[%s399 + $0xb8] sm:$0xff]
          %v793 = vld [vmem:[%s399 + $0xc0] sm:$0xff]
          %v794 = vld [vmem:[%s399 + $0xc8] sm:$0xff]
          %v795 = vld [vmem:[%s399 + $0xd0] sm:$0xff]
          %v796 = vld [vmem:[%s399 + $0xd8] sm:$0xff]
          %v797 = vld [vmem:[%s399 + $0xe0] sm:$0xff]
          %v798 = vld [vmem:[%s399 + $0xe8] sm:$0xff]
          %v799 = vld [vmem:[%s399 + $0xf0] sm:$0xff]
          %v800 = vld [vmem:[%s399 + $0xf8] sm:$0xff]
          %v801 = vld [vmem:[%s399 + $0x100] sm:$0xff]
          %v802 = vld [vmem:[%s399 + $0x108] sm:$0xff]
          %v803 = vld [vmem:[%s399 + $0x110] sm:$0xff]
          %v804 = vld [vmem:[%s399 + $0x118] sm:$0xff]
          %v805 = vld [vmem:[%s399 + $0x120] sm:$0xff]
          %v806 = vld [vmem:[%s399 + $0x128] sm:$0xff]
          %v807 = vld [vmem:[%s399 + $0x130] sm:$0xff]
          %v808 = vld [vmem:[%s399 + $0x138] sm:$0xff]
          %v809 = vld [vmem:[%s399 + $0x140] sm:$0xff]
          %v810 = vld [vmem:[%s399 + $0x148] sm:$0xff]
          %v811 = vld [vmem:[%s399 + $0x150] sm:$0xff]
          %v812 = vld [vmem:[%s399 + $0x158] sm:$0xff]
          %v813 = vld [vmem:[%s399 + $0x160] sm:$0xff]
          %v814 = vld [vmem:[%s399 + $0x168] sm:$0xff]
          %v815 = vld [vmem:[%s399 + $0x170] sm:$0xff]
          %v816 = vld [vmem:[%s399 + $0x178] sm:$0xff]
          %v817 = vld [vmem:[%s473] sm:$0x3]
          %v819 = vlaneseq
          %v820 = vshrl.u32 %v819, 7
          %v821 = vsub.s32 0, %v820
          %v822 = vrot.slane %v817, %v821
          %v823 = vlaneseq
          %v824 = vshrl.u32 %v823, 7
          %v825 = vsub.s32 1, %v824
          %v826 = vrot.slane %v817, %v825
          %v877 = vunpack.c.l.b16 %v769
          %v878 = vunpack.c.h.b16 %v769
          %v879 = vunpack.c.l.b16 %v770
          %v880 = vunpack.c.h.b16 %v770
          %v881 = vunpack.c.l.b16 %v771
          %v882 = vunpack.c.h.b16 %v771
          %v883 = vunpack.c.l.b16 %v772
          %v884 = vunpack.c.h.b16 %v772
          %v885 = vunpack.c.l.b16 %v773
          %v886 = vunpack.c.h.b16 %v773
          %v887 = vunpack.c.l.b16 %v774
          %v888 = vunpack.c.h.b16 %v774
          %v889 = vunpack.c.l.b16 %v775
          %v890 = vunpack.c.h.b16 %v775
          %v891 = vunpack.c.l.b16 %v776
          %v892 = vunpack.c.h.b16 %v776
          %v893 = vunpack.c.l.b16 %v777
          %v894 = vunpack.c.h.b16 %v777
          %v895 = vunpack.c.l.b16 %v778
          %v896 = vunpack.c.h.b16 %v778
          %v897 = vunpack.c.l.b16 %v779
          %v898 = vunpack.c.h.b16 %v779
          %v899 = vunpack.c.l.b16 %v780
          %v900 = vunpack.c.h.b16 %v780
          %v901 = vunpack.c.l.b16 %v781
          %v902 = vunpack.c.h.b16 %v781
          %v903 = vunpack.c.l.b16 %v782
          %v904 = vunpack.c.h.b16 %v782
          %v905 = vunpack.c.l.b16 %v783
          %v906 = vunpack.c.h.b16 %v783
          %v907 = vunpack.c.l.b16 %v784
          %v908 = vunpack.c.h.b16 %v784
          %v909 = vunpack.c.l.b16 %v785
          %v910 = vunpack.c.h.b16 %v785
          %v911 = vunpack.c.l.b16 %v786
          %v912 = vunpack.c.h.b16 %v786
          %v913 = vunpack.c.l.b16 %v787
          %v914 = vunpack.c.h.b16 %v787
          %v915 = vunpack.c.l.b16 %v788
          %v916 = vunpack.c.h.b16 %v788
          %v917 = vunpack.c.l.b16 %v789
          %v918 = vunpack.c.h.b16 %v789
          %v919 = vunpack.c.l.b16 %v790
          %v920 = vunpack.c.h.b16 %v790
          %v921 = vunpack.c.l.b16 %v791
          %v922 = vunpack.c.h.b16 %v791
          %v923 = vunpack.c.l.b16 %v792
          %v924 = vunpack.c.h.b16 %v792
          %v925 = vunpack.c.l.b16 %v793
          %v926 = vunpack.c.h.b16 %v793
          %v927 = vunpack.c.l.b16 %v794
          %v928 = vunpack.c.h.b16 %v794
          %v929 = vunpack.c.l.b16 %v795
          %v930 = vunpack.c.h.b16 %v795
          %v931 = vunpack.c.l.b16 %v796
          %v932 = vunpack.c.h.b16 %v796
          %v933 = vunpack.c.l.b16 %v797
          %v934 = vunpack.c.h.b16 %v797
          %v935 = vunpack.c.l.b16 %v798
          %v936 = vunpack.c.h.b16 %v798
          %v937 = vunpack.c.l.b16 %v799
          %v938 = vunpack.c.h.b16 %v799
          %v939 = vunpack.c.l.b16 %v800
          %v940 = vunpack.c.h.b16 %v800
          %v941 = vunpack.c.l.b16 %v801
          %v942 = vunpack.c.h.b16 %v801
          %v943 = vunpack.c.l.b16 %v802
          %v944 = vunpack.c.h.b16 %v802
          %v945 = vunpack.c.l.b16 %v803
          %v946 = vunpack.c.h.b16 %v803
          %v947 = vunpack.c.l.b16 %v804
          %v948 = vunpack.c.h.b16 %v804
          %v949 = vunpack.c.l.b16 %v805
          %v950 = vunpack.c.h.b16 %v805
          %v951 = vunpack.c.l.b16 %v806
          %v952 = vunpack.c.h.b16 %v806
          %v953 = vunpack.c.l.b16 %v807
          %v954 = vunpack.c.h.b16 %v807
          %v955 = vunpack.c.l.b16 %v808
          %v956 = vunpack.c.h.b16 %v808
          %v957 = vunpack.c.l.b16 %v809
          %v958 = vunpack.c.h.b16 %v809
          %v959 = vunpack.c.l.b16 %v810
          %v960 = vunpack.c.h.b16 %v810
          %v961 = vunpack.c.l.b16 %v811
          %v962 = vunpack.c.h.b16 %v811
          %v963 = vunpack.c.l.b16 %v812
          %v964 = vunpack.c.h.b16 %v812
          %v965 = vunpack.c.l.b16 %v813
          %v966 = vunpack.c.h.b16 %v813
          %v967 = vunpack.c.l.b16 %v814
          %v968 = vunpack.c.h.b16 %v814
          %v969 = vunpack.c.l.b16 %v815
          %v970 = vunpack.c.h.b16 %v815
          %v971 = vunpack.c.l.b16 %v816
          %v972 = vunpack.c.h.b16 %v816
          %v973 = vpack.c.b16 %v879, %v877
          %v974 = vpack.c.b16 %v880, %v878
          %v975 = vpack.c.b16 %v883, %v881
          %v976 = vpack.c.b16 %v884, %v882
          %v977 = vpack.c.b16 %v887, %v885
          %v978 = vpack.c.b16 %v888, %v886
          %v979 = vpack.c.b16 %v891, %v889
          %v980 = vpack.c.b16 %v892, %v890
          %v981 = vpack.c.b16 %v895, %v893
          %v982 = vpack.c.b16 %v896, %v894
          %v983 = vpack.c.b16 %v899, %v897
          %v984 = vpack.c.b16 %v900, %v898
          %v985 = vpack.c.b16 %v903, %v901
          %v986 = vpack.c.b16 %v904, %v902
          %v987 = vpack.c.b16 %v907, %v905
          %v988 = vpack.c.b16 %v908, %v906
          %v989 = vpack.c.b16 %v911, %v909
          %v990 = vpack.c.b16 %v912, %v910
          %v991 = vpack.c.b16 %v915, %v913
          %v992 = vpack.c.b16 %v916, %v914
          %v993 = vpack.c.b16 %v919, %v917
          %v994 = vpack.c.b16 %v920, %v918
          %v995 = vpack.c.b16 %v923, %v921
          %v996 = vpack.c.b16 %v924, %v922
          %v997 = vpack.c.b16 %v927, %v925
          %v998 = vpack.c.b16 %v928, %v926
          %v999 = vpack.c.b16 %v931, %v929
          %v1000 = vpack.c.b16 %v932, %v930
          %v1001 = vpack.c.b16 %v935, %v933
          %v1002 = vpack.c.b16 %v936, %v934
          %v1003 = vpack.c.b16 %v939, %v937
          %v1004 = vpack.c.b16 %v940, %v938
          %v1005 = vpack.c.b16 %v943, %v941
          %v1006 = vpack.c.b16 %v944, %v942
          %v1007 = vpack.c.b16 %v947, %v945
          %v1008 = vpack.c.b16 %v948, %v946
          %v1009 = vpack.c.b16 %v951, %v949
          %v1010 = vpack.c.b16 %v952, %v950
          %v1011 = vpack.c.b16 %v955, %v953
          %v1012 = vpack.c.b16 %v956, %v954
          %v1013 = vpack.c.b16 %v959, %v957
          %v1014 = vpack.c.b16 %v960, %v958
          %v1015 = vpack.c.b16 %v963, %v961
          %v1016 = vpack.c.b16 %v964, %v962
          %v1017 = vpack.c.b16 %v967, %v965
          %v1018 = vpack.c.b16 %v968, %v966
          %v1019 = vpack.c.b16 %v971, %v969
          %v1020 = vpack.c.b16 %v972, %v970
          %1069 = vmatprep.subr.bf16.mxu0 %v974
          %1070 = vmatpush1.bf16.msra.mxu0 %v973
          %1071 = vmatprep.subr.bf16.mxu0 %v976
          %1072 = vmatpush1.bf16.msra.mxu0 %v975
          %1073 = vmatprep.subr.bf16.mxu0 %v978
          %1074 = vmatpush1.bf16.msra.mxu0 %v977
          %1075 = vmatprep.subr.bf16.mxu0 %v980
          %1076 = vmatpush1.bf16.msra.mxu0 %v979
          %1077 = vmatprep.subr.bf16.mxu0 %v982
          %1078 = vmatpush1.bf16.msra.mxu0 %v981
          %1079 = vmatprep.subr.bf16.mxu0 %v984
          %1080 = vmatpush1.bf16.msra.mxu0 %v983
          %1081 = vmatprep.subr.bf16.mxu0 %v986
          %1082 = vmatpush1.bf16.msra.mxu0 %v985
          %1083 = vmatprep.subr.bf16.mxu0 %v988
          %1084 = vmatpush1.bf16.msra.mxu0 %v987
          %1085 = vmatprep.subr.bf16.mxu0 %v990
          %1086 = vmatpush1.bf16.msra.mxu0 %v989
          %1087 = vmatprep.subr.bf16.mxu0 %v992
          %1088 = vmatpush1.bf16.msra.mxu0 %v991
          %1089 = vmatprep.subr.bf16.mxu0 %v994
          %1090 = vmatpush1.bf16.msra.mxu0 %v993
          %1091 = vmatprep.subr.bf16.mxu0 %v996
          %1092 = vmatpush1.bf16.msra.mxu0 %v995
          %1093 = vmatprep.subr.bf16.mxu0 %v998
          %1094 = vmatpush1.bf16.msra.mxu0 %v997
          %1095 = vmatprep.subr.bf16.mxu0 %v1000
          %1096 = vmatpush1.bf16.msra.mxu0 %v999
          %1097 = vmatprep.subr.bf16.mxu0 %v1002
          %1098 = vmatpush1.bf16.msra.mxu0 %v1001
          %1099 = vmatprep.subr.bf16.mxu0 %v1004
          %1100 = vmatpush1.bf16.msra.mxu0 %v1003
          %1101 = vmatprep.mubr.bf16.mxu0 %v767
          %1102 = vmatmul.mubr.bf16.gmra.mrb[0].mxu0 %v766
          %v1103 = vpop.f32.mrb[0].mxu0
          %v1104 = vadd.f32 %v822, %v1103
          %v1105 = vpop.f32.mrb[0].mxu0
          %v1106 = vadd.f32 %v826, %v1105
          %v1107 = vpop.f32.mrb[0].mxu0
          %v1108 = vpop.f32.mrb[0].mxu0
          %1109 = vdwg.mxu0
          %1110 = vmatprep.subr.bf16.mxu0 %v1006
          %1111 = vmatpush1.bf16.msra.mxu0 %v1005
          %1112 = vmatprep.subr.bf16.mxu0 %v1008
          %1113 = vmatpush1.bf16.msra.mxu0 %v1007
          %1114 = vmatprep.subr.bf16.mxu0 %v1010
          %1115 = vmatpush1.bf16.msra.mxu0 %v1009
          %1116 = vmatprep.subr.bf16.mxu0 %v1012
          %1117 = vmatpush1.bf16.msra.mxu0 %v1011
          %1118 = vmatprep.subr.bf16.mxu0 %v1014
          %1119 = vmatpush1.bf16.msra.mxu0 %v1013
          %1120 = vmatprep.subr.bf16.mxu0 %v1016
          %1121 = vmatpush1.bf16.msra.mxu0 %v1015
          %1122 = vmatprep.subr.bf16.mxu0 %v1018
          %1123 = vmatpush1.bf16.msra.mxu0 %v1017
          %1124 = vmatprep.subr.bf16.mxu0 %v1020
          %1125 = vmatpush1.bf16.msra.mxu0 %v1019
          %1126 = vmatprep.subr.bf16.mxu0 0
          %1127 = vmatpush1.bf16.msra.mxu0 0
          %1128 = vmatprep.subr.bf16.mxu0 0
          %1129 = vmatpush1.bf16.msra.mxu0 0
          %1130 = vmatprep.subr.bf16.mxu0 0
          %1131 = vmatpush1.bf16.msra.mxu0 0
          %1132 = vmatprep.subr.bf16.mxu0 0
          %1133 = vmatpush1.bf16.msra.mxu0 0
          %1134 = vmatprep.subr.bf16.mxu0 0
          %1135 = vmatpush1.bf16.msra.mxu0 0
          %1136 = vmatprep.subr.bf16.mxu0 0
          %1137 = vmatpush1.bf16.msra.mxu0 0
          %1138 = vmatprep.subr.bf16.mxu0 0
          %1139 = vmatpush1.bf16.msra.mxu0 0
          %1140 = vmatprep.subr.bf16.mxu0 0
          %1141 = vmatpush1.bf16.msra.mxu0 0
          %1142 = vmatprep.mubr.bf16.mxu0 0
          %1143 = vmatmul.mubr.bf16.gmra.mrb[0].mxu0 %v768
          %v1144 = vpop.f32.mrb[0].mxu0
          %v1145 = vadd.f32 %v1104, %v1144
          %v1146 = vpop.f32.mrb[0].mxu0
          %v1147 = vadd.f32 %v1106, %v1146
          %v1148 = vpop.f32.mrb[0].mxu0
          %v1149 = vpop.f32.mrb[0].mxu0
          %1150 = vdwg.mxu0
          %v1151 = vmax.f32 %v1145, 0.0
          %v1152 = vmax.f32 %v1147, 0.0
          %v1153 = vpack.c.bf16 %v1151, %v1151
          %v1154 = vpack.c.bf16 %v1152, %v1152
          %v1155 = vld [vmem:[%s408] sm:$0xf]
          %v1156 = vld [vmem:[%s408 + $0x4] sm:$0xf]
          %v1157 = vld [vmem:[%s408 + $0x8] sm:$0xf]
          %v1158 = vld [vmem:[%s408 + $0xc] sm:$0xf]
          %v1159 = vld [vmem:[%s408 + $0x10] sm:$0xf]
          %v1160 = vld [vmem:[%s408 + $0x14] sm:$0xf]
          %v1161 = vld [vmem:[%s408 + $0x18] sm:$0xf]
          %v1162 = vld [vmem:[%s408 + $0x1c] sm:$0xf]
          %v1163 = vld [vmem:[%s408 + $0x20] sm:$0xf]
          %v1164 = vld [vmem:[%s408 + $0x24] sm:$0xf]
          %v1165 = vld [vmem:[%s408 + $0x28] sm:$0xf]
          %v1166 = vld [vmem:[%s408 + $0x2c] sm:$0xf]
          %v1167 = vld [vmem:[%s408 + $0x30] sm:$0xf]
          %v1168 = vld [vmem:[%s408 + $0x34] sm:$0xf]
          %v1169 = vld [vmem:[%s408 + $0x38] sm:$0xf]
          %v1170 = vld [vmem:[%s408 + $0x3c] sm:$0xf]
          %v1171 = vld [vmem:[%s408 + $0x40] sm:$0xf]
          %v1172 = vld [vmem:[%s408 + $0x44] sm:$0xf]
          %v1173 = vld [vmem:[%s408 + $0x48] sm:$0xf]
          %v1174 = vld [vmem:[%s408 + $0x4c] sm:$0xf]
          %v1175 = vld [vmem:[%s408 + $0x50] sm:$0xf]
          %v1176 = vld [vmem:[%s408 + $0x54] sm:$0xf]
          %v1177 = vld [vmem:[%s408 + $0x58] sm:$0xf]
          %v1178 = vld [vmem:[%s408 + $0x5c] sm:$0xf]
          %v1179 = vld [vmem:[%s408 + $0x60] sm:$0xf]
          %v1180 = vld [vmem:[%s408 + $0x64] sm:$0xf]
          %v1181 = vld [vmem:[%s408 + $0x68] sm:$0xf]
          %v1182 = vld [vmem:[%s408 + $0x6c] sm:$0xf]
          %v1183 = vld [vmem:[%s408 + $0x70] sm:$0xf]
          %v1184 = vld [vmem:[%s408 + $0x74] sm:$0xf]
          %v1185 = vld [vmem:[%s408 + $0x78] sm:$0xf]
          %v1186 = vld [vmem:[%s408 + $0x7c] sm:$0xf]
          %v1187 = vld [vmem:[%s476] sm:$0x1]
          %v1189 = vlaneseq
          %v1190 = vshrl.u32 %v1189, 7
          %v1191 = vsub.s32 0, %v1190
          %v1192 = vrot.slane %v1187, %v1191
          %v1226 = vunpack.c.l.b16 %v1155
          %v1227 = vunpack.c.l.b16 %v1156
          %v1228 = vunpack.c.l.b16 %v1157
          %v1229 = vunpack.c.l.b16 %v1158
          %v1230 = vunpack.c.l.b16 %v1159
          %v1231 = vunpack.c.l.b16 %v1160
          %v1232 = vunpack.c.l.b16 %v1161
          %v1233 = vunpack.c.l.b16 %v1162
          %v1234 = vunpack.c.l.b16 %v1163
          %v1235 = vunpack.c.l.b16 %v1164
          %v1236 = vunpack.c.l.b16 %v1165
          %v1237 = vunpack.c.l.b16 %v1166
          %v1238 = vunpack.c.l.b16 %v1167
          %v1239 = vunpack.c.l.b16 %v1168
          %v1240 = vunpack.c.l.b16 %v1169
          %v1241 = vunpack.c.l.b16 %v1170
          %v1242 = vunpack.c.l.b16 %v1171
          %v1243 = vunpack.c.l.b16 %v1172
          %v1244 = vunpack.c.l.b16 %v1173
          %v1245 = vunpack.c.l.b16 %v1174
          %v1246 = vunpack.c.l.b16 %v1175
          %v1247 = vunpack.c.l.b16 %v1176
          %v1248 = vunpack.c.l.b16 %v1177
          %v1249 = vunpack.c.l.b16 %v1178
          %v1250 = vunpack.c.l.b16 %v1179
          %v1251 = vunpack.c.l.b16 %v1180
          %v1252 = vunpack.c.l.b16 %v1181
          %v1253 = vunpack.c.l.b16 %v1182
          %v1254 = vunpack.c.l.b16 %v1183
          %v1255 = vunpack.c.l.b16 %v1184
          %v1256 = vunpack.c.l.b16 %v1185
          %v1257 = vunpack.c.l.b16 %v1186
          %v1258 = vpack.c.b16 %v1227, %v1226
          %v1259 = vpack.c.b16 %v1229, %v1228
          %v1260 = vpack.c.b16 %v1231, %v1230
          %v1261 = vpack.c.b16 %v1233, %v1232
          %v1262 = vpack.c.b16 %v1235, %v1234
          %v1263 = vpack.c.b16 %v1237, %v1236
          %v1264 = vpack.c.b16 %v1239, %v1238
          %v1265 = vpack.c.b16 %v1241, %v1240
          %v1266 = vpack.c.b16 %v1243, %v1242
          %v1267 = vpack.c.b16 %v1245, %v1244
          %v1268 = vpack.c.b16 %v1247, %v1246
          %v1269 = vpack.c.b16 %v1249, %v1248
          %v1270 = vpack.c.b16 %v1251, %v1250
          %v1271 = vpack.c.b16 %v1253, %v1252
          %v1272 = vpack.c.b16 %v1255, %v1254
          %v1273 = vpack.c.b16 %v1257, %v1256
          %1290 = vmatprep.subr.bf16.mxu0 0
          %1291 = vmatpush1.bf16.msra.mxu0 %v1258
          %1292 = vmatprep.subr.bf16.mxu0 0
          %1293 = vmatpush1.bf16.msra.mxu0 %v1259
          %1294 = vmatprep.subr.bf16.mxu0 0
          %1295 = vmatpush1.bf16.msra.mxu0 %v1260
          %1296 = vmatprep.subr.bf16.mxu0 0
          %1297 = vmatpush1.bf16.msra.mxu0 %v1261
          %1298 = vmatprep.subr.bf16.mxu0 0
          %1299 = vmatpush1.bf16.msra.mxu0 %v1262
          %1300 = vmatprep.subr.bf16.mxu0 0
          %1301 = vmatpush1.bf16.msra.mxu0 %v1263
          %1302 = vmatprep.subr.bf16.mxu0 0
          %1303 = vmatpush1.bf16.msra.mxu0 %v1264
          %1304 = vmatprep.subr.bf16.mxu0 0
          %1305 = vmatpush1.bf16.msra.mxu0 %v1265
          %1306 = vmatprep.subr.bf16.mxu0 0
          %1307 = vmatpush1.bf16.msra.mxu0 %v1266
          %1308 = vmatprep.subr.bf16.mxu0 0
          %1309 = vmatpush1.bf16.msra.mxu0 %v1267
          %1310 = vmatprep.subr.bf16.mxu0 0
          %1311 = vmatpush1.bf16.msra.mxu0 %v1268
          %1312 = vmatprep.subr.bf16.mxu0 0
          %1313 = vmatpush1.bf16.msra.mxu0 %v1269
          %1314 = vmatprep.subr.bf16.mxu0 0
          %1315 = vmatpush1.bf16.msra.mxu0 %v1270
          %1316 = vmatprep.subr.bf16.mxu0 0
          %1317 = vmatpush1.bf16.msra.mxu0 %v1271
          %1318 = vmatprep.subr.bf16.mxu0 0
          %1319 = vmatpush1.bf16.msra.mxu0 %v1272
          %1320 = vmatprep.subr.bf16.mxu0 0
          %1321 = vmatpush1.bf16.msra.mxu0 %v1273
          %1322 = vmatprep.mubr.bf16.mxu0 %v1154
          %1323 = vmatmul.mubr.bf16.gmra.mrb[0].mxu0 %v1153
          %v1324 = vpop.f32.mrb[0].mxu0
          %v1325 = vadd.f32 %v1192, %v1324
          %v1326 = vpop.f32.mrb[0].mxu0
          %v1327 = vpop.f32.mrb[0].mxu0
          %v1328 = vpop.f32.mrb[0].mxu0
          %1329 = vdwg.mxu0
          %v1330 = vmax.f32 %v1325, 0.0
          %1331 = vst [vmem:[%s464] sm:$0xff] %v1330
        $region72: #{fused_heads.1} parent=47 // pred_fallthru
          _
        %s1332 = sand.u32 %s234, 1
        %s1333 = scalar_lea.sflag [#allocation5], %s1332
        %s1334 = sand.u32 %s234, 1
        %s1335 = smul.addr %s1334, 8
        %s1336 = scalar_lea.vmem [#allocation11], %s1335
        // Predicated region
        $region73: #{fused_heads.1} parent=47 // pred_check
          %p1337 = pneg %p244
        $region74: #{fused_heads.1} parent=47 // pred_check_branch
          %1339 = sbr.rel (%p1337) target = $region76
        $region75: #{fused_heads.1} parent=47 // pred_region
          %s1341 = ssub.s32 128, 128
          %1342 = vsyncadd %s1333, %s1341
          %s1343 = smul.addr %s34, 128
          %s1344 = scalar_lea.hbm %s7, %s1343
          %s1346 = sshll.u32 %s1336, 4
          %s1347 = int_to_ptr.vmem [resolvable:$true] %s1346
          %1349 = dma.vmem_to_hbm [thread:$0]  %s1347, 128, %s1344, %s1333
        $region76: #{fused_heads.1} parent=47 // pred_fallthru
          _
      $region48: #{fused_heads.1} parent=5 // pred_fallthru
        _
      %p1350 = scmp.le.s32.totalorder 2, %s25
      // Predicated region
      $region77: #{fused_heads.1} parent=5 // pred_check
        %p1351 = pneg %p1350
      $region78: #{fused_heads.1} parent=5 // pred_check_branch
        %1353 = sbr.rel (%p1351) target = $region80
      $region79: #{fused_heads.1} parent=5 // pred_region
        %s1354 = ssub.s32 %s25, 2
        // Predicated region
        $region81: #{fused_heads.1} parent=79 // pred_check
          %p1355 = pneg %p250
        $region82: #{fused_heads.1} parent=79 // pred_check_branch
          %1357 = sbr.rel (%p1355) target = $region84
        $region83: #{fused_heads.1} parent=79 // pred_region
          %s1358 = sand.u32 %s235, 1
          %s1359 = scalar_lea.sflag [#allocation5], %s1358
          %s1360 = sand.u32 %s235, 1
          %s1361 = smul.addr %s1360, 8
          %s1362 = scalar_lea.vmem [#allocation11], %s1361
          %1363 = dma.done %s1359, 128
        $region84: #{fused_heads.1} parent=79 // pred_fallthru
          _
      $region80: #{fused_heads.1} parent=5 // pred_fallthru
        _
    $region6: #{fused_heads.1} parent=1 // loop_footer
      %s29 = sadd.s32 1, %s25
    $region7: #{fused_heads.1} parent=1 // loop_footer_branch
      %24 = sbr.rel target = $region3
    $region8: #{fused_heads.1} parent=1 // loop_exit
      _
    %1364 = vsyncpa [#allocation4], 1
    %s1365 = scalar_lea.sflag [#allocation4], 1
    %1366 = vsyncpa %s1365, 1
    %1367 = vsyncpa [#allocation7], 1
    %s1368 = scalar_lea.sflag [#allocation7], 1
    %1369 = vsyncpa %s1368, 1
    %1370 = vsyncpa [#allocation10], 1
    %s1371 = scalar_lea.sflag [#allocation10], 1
    %1372 = vsyncpa %s1371, 1
    %1373 = vsyncpa [#allocation5], 1
    %s1374 = scalar_lea.sflag [#allocation5], 1
    %1375 = vsyncpa %s1374, 1

</llo_original>
